<compile_context>
chip_gen: v5e
topology: v5e:2x2
jax: 0.10.0
libtpu: 0.0.40
codegen_flags: <defaults>
</compile_context>

<pallas_src>
import functools

import jax
import jax.numpy as jnp
from jax.experimental import pallas as pl
from jax.experimental.pallas import tpu as pltpu


# --------------------------------------------------------------------------
# Embedding kernel: out[b, s] = tok_emb[src[b, s]] * sqrt(H) + pos_emb[s]
# --------------------------------------------------------------------------
def embed_kernel(ids_ref, tok_tbl_ref, pos_tbl_ref, out_ref, *, emb_scale, seq_len):
    b = pl.program_id(0)
    for s in range(seq_len):                      # static, small S
        tok_id = ids_ref[b, s]                    # scalar read from SMEM
        row = tok_tbl_ref[pl.ds(tok_id, 1), :]    # (1, H) dynamic row gather in VMEM
        out_ref[0, s:s + 1, :] = row * emb_scale + pos_tbl_ref[s:s + 1, :]


def embed_pallas(src_ids, tok_emb, pos_emb):
    B, S = src_ids.shape
    V, H = tok_emb.shape
    kernel = functools.partial(embed_kernel, emb_scale=float(H) ** 0.5, seq_len=S)
    return pl.pallas_call(
        kernel,
        grid_spec=pltpu.PrefetchScalarGridSpec(
            num_scalar_prefetch=1,
            grid=(B,),
            in_specs=[
                pl.BlockSpec((V, H), lambda b, ids: (0, 0)),      # token table (resident)
                pl.BlockSpec((S, H), lambda b, ids: (0, 0)),      # positional rows 0..S-1
            ],
            out_specs=pl.BlockSpec((1, S, H), lambda b, ids: (b, 0, 0)),
        ),
        out_shape=jax.ShapeDtypeStruct((B, S, H), tok_emb.dtype),
        compiler_params=pltpu.CompilerParams(
            dimension_semantics=("parallel",),
            vmem_limit_bytes=32 * 1024 * 1024),
    )(src_ids, tok_emb, pos_emb)


# --------------------------------------------------------------------------
# Fused EncoderLayer kernel (one batch element per grid step)
# --------------------------------------------------------------------------
def _layer_norm(h, gamma, beta, eps=1e-5):
    mu = jnp.mean(h, axis=-1, keepdims=True)
    var = jnp.mean(jnp.square(h - mu), axis=-1, keepdims=True)
    return (h - mu) * jax.lax.rsqrt(var + eps) * gamma + beta


def encoder_layer_kernel(x_ref, mask_ref,
                         wqkv_ref, bqkv_ref, wo_ref, bo_ref,
                         ln1_w_ref, ln1_b_ref,
                         w1_ref, b1_ref, w2_ref, b2_ref,
                         ln2_w_ref, ln2_b_ref,
                         out_ref, *, n_heads, head_dim):
    S = x_ref.shape[1]
    H = n_heads * head_dim

    x = x_ref[0]                  # (S, H), kept in its input dtype
    mask = mask_ref[0]            # (1, 1, S) int32 key mask

    # ---- fused QKV projection (pre-transposed, pre-concatenated weights) ----
    qkv = jnp.dot(x, wqkv_ref[...], preferred_element_type=jnp.float32) + bqkv_ref[...]
    q = qkv[:, 0 * H:1 * H]
    k = qkv[:, 1 * H:2 * H]
    v = qkv[:, 2 * H:3 * H]

    # fold 1/sqrt(d) into q: O(S*H) multiplies instead of O(h*S^2) divides
    inv_scale = jnp.float32(1.0 / (float(head_dim) ** 0.5))
    qh = jnp.transpose((q * inv_scale).astype(x.dtype).reshape(S, n_heads, head_dim), (1, 0, 2))
    kh = jnp.transpose(k.astype(x.dtype).reshape(S, n_heads, head_dim), (1, 0, 2))
    vh = jnp.transpose(v.astype(x.dtype).reshape(S, n_heads, head_dim), (1, 0, 2))

    # ---- batched attention over the head axis (no python loop / lane slicing) ----
    energy = jnp.einsum('hqd,hkd->hqk', qh, kh, preferred_element_type=jnp.float32)
    energy = jnp.where(mask == 0, jnp.float32(-1e10), energy)
    m = jnp.max(energy, axis=-1, keepdims=True)
    p = jnp.exp(energy - m)
    l = jnp.sum(p, axis=-1, keepdims=True)
    attn = p * pl.reciprocal(l)               # reciprocal-multiply softmax normalization
    # dropout(attention) is identity in eval mode

    ctx = jnp.einsum('hqk,hkd->hqd', attn.astype(vh.dtype), vh,
                     preferred_element_type=jnp.float32)          # (h, S, d)
    ctx = jnp.transpose(ctx, (1, 0, 2)).reshape(S, H)             # heads back onto lanes

    sa = jnp.dot(ctx.astype(x.dtype), wo_ref[...],
                 preferred_element_type=jnp.float32) + bo_ref[...]

    # ---- residual + LayerNorm 1 (dropout = identity in eval) ----
    y = _layer_norm(x.astype(jnp.float32) + sa, ln1_w_ref[...], ln1_b_ref[...])

    # ---- position-wise feed-forward ----
    h1 = jnp.maximum(
        jnp.dot(y.astype(x.dtype), w1_ref[...], preferred_element_type=jnp.float32)
        + b1_ref[...], 0.0)
    ff = jnp.dot(h1.astype(x.dtype), w2_ref[...],
                 preferred_element_type=jnp.float32) + b2_ref[...]

    # ---- residual + LayerNorm 2 ----
    z = _layer_norm(y + ff, ln2_w_ref[...], ln2_b_ref[...])
    out_ref[0] = z.astype(out_ref.dtype)


def encoder_layer_pallas(x, src_mask, packed, *, n_heads):
    B, S, H = x.shape
    head_dim = H // n_heads
    kernel = functools.partial(encoder_layer_kernel, n_heads=n_heads, head_dim=head_dim)

    def full_spec(arr):
        return pl.BlockSpec(arr.shape, lambda b, _n=arr.ndim: (0,) * _n)

    in_specs = [
        pl.BlockSpec((1, S, H), lambda b: (b, 0, 0)),          # x
        pl.BlockSpec((1, 1, 1, S), lambda b: (b, 0, 0, 0)),    # src_mask
        full_spec(packed["wqkv_t"]), full_spec(packed["bqkv"]),
        full_spec(packed["wo_t"]), full_spec(packed["bo"]),
        full_spec(packed["ln1_w"]), full_spec(packed["ln1_b"]),
        full_spec(packed["w1_t"]), full_spec(packed["b1"]),
        full_spec(packed["w2_t"]), full_spec(packed["b2"]),
        full_spec(packed["ln2_w"]), full_spec(packed["ln2_b"]),
    ]
    return pl.pallas_call(
        kernel,
        grid=(B,),
        in_specs=in_specs,
        out_specs=pl.BlockSpec((1, S, H), lambda b: (b, 0, 0)),
        out_shape=jax.ShapeDtypeStruct((B, S, H), x.dtype),
        compiler_params=pltpu.CompilerParams(
            dimension_semantics=("parallel",),
            vmem_limit_bytes=32 * 1024 * 1024),
    )(x, src_mask,
      packed["wqkv_t"], packed["bqkv"], packed["wo_t"], packed["bo"],
      packed["ln1_w"], packed["ln1_b"],
      packed["w1_t"], packed["b1"], packed["w2_t"], packed["b2"],
      packed["ln2_w"], packed["ln2_b"])


# --------------------------------------------------------------------------
# Host-side parameter packing (one-time; keeps all transposes out of the kernel)
# --------------------------------------------------------------------------
def pack_layer(p):
    H = p["wq"].shape[0]
    wqkv_t = jnp.concatenate([p["wq"], p["wk"], p["wv"]], axis=0).T       # (H, 3H)
    bqkv = jnp.concatenate([p["bq"], p["bk"], p["bv"]]).reshape(1, 3 * H)
    return dict(
        wqkv_t=wqkv_t, bqkv=bqkv,
        wo_t=p["wo"].T, bo=p["bo"].reshape(1, H),
        ln1_w=p["ln1_w"].reshape(1, H), ln1_b=p["ln1_b"].reshape(1, H),
        w1_t=p["w1"].T, b1=p["b1"].reshape(1, -1),
        w2_t=p["w2"].T, b2=p["b2"].reshape(1, H),
        ln2_w=p["ln2_w"].reshape(1, H), ln2_b=p["ln2_b"].reshape(1, H),
    )


def encoder_forward(src, src_mask, params, *, n_heads):
    B, S = src.shape
    x = embed_pallas(src, params["tok_emb"], params["pos_emb"][:S])
    for layer in params["layers"]:
        x = encoder_layer_pallas(x, src_mask, pack_layer(layer), n_heads=n_heads)
    return x


# --------------------------------------------------------------------------
# Pure-JAX reference mirroring the PyTorch forward, for verification
# --------------------------------------------------------------------------
def _layer_norm_ref(x, g, b, eps=1e-5):
    mu = jnp.mean(x, axis=-1, keepdims=True)
    var = jnp.mean(jnp.square(x - mu), axis=-1, keepdims=True)
    return (x - mu) / jnp.sqrt(var + eps) * g + b


def encoder_layer_reference(x, mask, p, *, n_heads):
    B, S, H = x.shape
    d = H // n_heads
    lin = lambda h, w, b: h @ w.T + b
    q = lin(x, p["wq"], p["bq"]).reshape(B, S, n_heads, d).transpose(0, 2, 1, 3)
    k = lin(x, p["wk"], p["bk"]).reshape(B, S, n_heads, d).transpose(0, 2, 1, 3)
    v = lin(x, p["wv"], p["bv"]).reshape(B, S, n_heads, d).transpose(0, 2, 1, 3)
    energy = jnp.einsum('bhqd,bhkd->bhqk', q, k) / jnp.sqrt(jnp.float32(d))
    energy = jnp.where(mask == 0, -1e10, energy)
    attn = jax.nn.softmax(energy, axis=-1)
    ctx = jnp.einsum('bhqk,bhkd->bhqd', attn, v).transpose(0, 2, 1, 3).reshape(B, S, H)
    sa = lin(ctx, p["wo"], p["bo"])
    y = _layer_norm_ref(x + sa, p["ln1_w"], p["ln1_b"])
    ff = lin(jnp.maximum(lin(y, p["w1"], p["b1"]), 0.0), p["w2"], p["b2"])
    return _layer_norm_ref(y + ff, p["ln2_w"], p["ln2_b"])


def encoder_reference(src, src_mask, params, *, n_heads):
    B, S = src.shape
    H = params["tok_emb"].shape[1]
    x = params["tok_emb"][src] * jnp.sqrt(jnp.float32(H)) + params["pos_emb"][:S][None]
    for layer in params["layers"]:
        x = encoder_layer_reference(x, src_mask, layer, n_heads=n_heads)
    return x


# --------------------------------------------------------------------------
# Deterministic init + self-test
# --------------------------------------------------------------------------
def init_params(key, input_dim, hid_dim, n_layers, n_heads, pf_dim, max_len):
    keys = jax.random.split(key, 2 + n_layers)
    uni = lambda k, shape, bnd: jax.random.uniform(k, shape, jnp.float32, -bnd, bnd)
    params = {
        "tok_emb": jax.random.normal(keys[0], (input_dim, hid_dim), jnp.float32),
        "pos_emb": jax.random.normal(keys[1], (max_len, hid_dim), jnp.float32),
        "layers": [],
    }
    bh, bp = 1.0 / (hid_dim ** 0.5), 1.0 / (pf_dim ** 0.5)
    for li in range(n_layers):
        lk = jax.random.split(keys[2 + li], 12)
        params["layers"].append(dict(
            wq=uni(lk[0], (hid_dim, hid_dim), bh), bq=uni(lk[1], (hid_dim,), bh),
            wk=uni(lk[2], (hid_dim, hid_dim), bh), bk=uni(lk[3], (hid_dim,), bh),
            wv=uni(lk[4], (hid_dim, hid_dim), bh), bv=uni(lk[5], (hid_dim,), bh),
            wo=uni(lk[6], (hid_dim, hid_dim), bh), bo=uni(lk[7], (hid_dim,), bh),
            ln1_w=jnp.ones((hid_dim,), jnp.float32), ln1_b=jnp.zeros((hid_dim,), jnp.float32),
            w1=uni(lk[8], (pf_dim, hid_dim), bh), b1=uni(lk[9], (pf_dim,), bh),
            w2=uni(lk[10], (hid_dim, pf_dim), bp), b2=uni(lk[11], (hid_dim,), bp),
            ln2_w=jnp.ones((hid_dim,), jnp.float32), ln2_b=jnp.zeros((hid_dim,), jnp.float32),
        ))
    return params


if __name__ == "__main__":
    input_dim, hid_dim, n_layers, n_heads, pf_dim, max_len = 100, 32, 2, 4, 64, 50
    B, S = 2, 8
    dropout = 0.0  # eval-mode / identity

    root = jax.random.PRNGKey(0)
    k_params, k_src = jax.random.split(root)
    params = init_params(k_params, input_dim, hid_dim, n_layers, n_heads, pf_dim, max_len)

    src = jax.random.randint(k_src, (B, S), 0, input_dim, dtype=jnp.int32)
    src_mask = jnp.ones((B, 1, 1, S), jnp.int32)
    src_mask = src_mask.at[1, :, :, S - 2:].set(0)   # pad-mask last two keys of batch 1

    out = encoder_forward(src, src_mask, params, n_heads=n_heads)
    jax.block_until_ready(out)

    with jax.default_matmul_precision("float32"):
        ref = encoder_reference(src, src_mask, params, n_heads=n_heads)

    assert out.shape == (B, S, hid_dim)
    err = float(jnp.max(jnp.abs(out - ref)))
    assert jnp.allclose(out, ref, atol=5e-4, rtol=5e-4), f"max abs err {err}"

    print("KERNEL_OK")
</pallas_src>

<mosaic_0001>
module attributes {stable_mosaic.version = 11 : i64} {
  func.func @embed_kernel(%arg0: i32, %arg1: memref<2x8xi32, #tpu.memory_space<smem>>, %arg2: memref<100x32xf32, #tpu.memory_space<vmem>>, %arg3: memref<8x32xf32, #tpu.memory_space<vmem>>, %arg4: memref<1x8x32xf32, #tpu.memory_space<vmem>>) attributes {dimension_semantics = [#tpu.dimension_semantics<parallel>], iteration_bounds = array<i64: 2>, scalar_prefetch = 1 : i64, scratch_operands = 0 : i64, tpu.core_type = #tpu.core_type<tc>, window_params = [{pipeline_mode = #tpu.pipeline_mode<synchronous>, transform_indices = @transform_0, window_bounds = array<i64: 100, 32>}, {pipeline_mode = #tpu.pipeline_mode<synchronous>, transform_indices = @transform_1, window_bounds = array<i64: 8, 32>}, {transform_indices = @transform_2, window_bounds = array<i64: 1, 8, 32>}]} {
    %0 = arith.index_cast %arg0 : i32 to index
    %c0 = arith.constant 0 : index
    %1 = memref.load %arg1[%0, %c0] : memref<2x8xi32, #tpu.memory_space<smem>>
    %2 = arith.index_cast %1 : i32 to index
    %c0_0 = arith.constant 0 : index
    %3 = vector.load %arg2[%2, %c0_0] : memref<100x32xf32, #tpu.memory_space<vmem>>, vector<1x32xf32>
    %cst = arith.constant 5.65685415 : f32
    %4 = vector.broadcast %cst : f32 to vector<1x32xf32>
    %5 = arith.mulf %3, %4 : vector<1x32xf32>
    %c0_1 = arith.constant 0 : index
    %c0_2 = arith.constant 0 : index
    %6 = vector.load %arg3[%c0_1, %c0_2] : memref<8x32xf32, #tpu.memory_space<vmem>>, vector<1x32xf32>
    %7 = arith.addf %5, %6 : vector<1x32xf32>
    %c0_3 = arith.constant 0 : index
    %c0_4 = arith.constant 0 : index
    %c0_5 = arith.constant 0 : index
    %8 = vector.load %arg4[%c0_3, %c0_4, %c0_5] : memref<1x8x32xf32, #tpu.memory_space<vmem>>, vector<1x1x32xf32>
    %9 = vector.shape_cast %8 : vector<1x1x32xf32> to vector<1x32xf32>
    %10 = vector.shape_cast %7 : vector<1x32xf32> to vector<1x1x32xf32>
    tpu.vector_store %arg4[%c0_3, %c0_4, %c0_5], %10 {strides = array<i32>} : memref<1x8x32xf32, #tpu.memory_space<vmem>>, vector<1x1x32xf32>,
    %11 = arith.index_cast %arg0 : i32 to index
    %c1 = arith.constant 1 : index
    %12 = memref.load %arg1[%11, %c1] : memref<2x8xi32, #tpu.memory_space<smem>>
    %13 = arith.index_cast %12 : i32 to index
    %c0_6 = arith.constant 0 : index
    %14 = vector.load %arg2[%13, %c0_6] : memref<100x32xf32, #tpu.memory_space<vmem>>, vector<1x32xf32>
    %cst_7 = arith.constant 5.65685415 : f32
    %15 = vector.broadcast %cst_7 : f32 to vector<1x32xf32>
    %16 = arith.mulf %14, %15 : vector<1x32xf32>
    %c1_8 = arith.constant 1 : index
    %c0_9 = arith.constant 0 : index
    %17 = vector.load %arg3[%c1_8, %c0_9] : memref<8x32xf32, #tpu.memory_space<vmem>>, vector<1x32xf32>
    %18 = arith.addf %16, %17 : vector<1x32xf32>
    %c0_10 = arith.constant 0 : index
    %c1_11 = arith.constant 1 : index
    %c0_12 = arith.constant 0 : index
    %19 = vector.load %arg4[%c0_10, %c1_11, %c0_12] : memref<1x8x32xf32, #tpu.memory_space<vmem>>, vector<1x1x32xf32>
    %20 = vector.shape_cast %19 : vector<1x1x32xf32> to vector<1x32xf32>
    %21 = vector.shape_cast %18 : vector<1x32xf32> to vector<1x1x32xf32>
    tpu.vector_store %arg4[%c0_10, %c1_11, %c0_12], %21 {strides = array<i32>} : memref<1x8x32xf32, #tpu.memory_space<vmem>>, vector<1x1x32xf32>,
    %22 = arith.index_cast %arg0 : i32 to index
    %c2 = arith.constant 2 : index
    %23 = memref.load %arg1[%22, %c2] : memref<2x8xi32, #tpu.memory_space<smem>>
    %24 = arith.index_cast %23 : i32 to index
    %c0_13 = arith.constant 0 : index
    %25 = vector.load %arg2[%24, %c0_13] : memref<100x32xf32, #tpu.memory_space<vmem>>, vector<1x32xf32>
    %cst_14 = arith.constant 5.65685415 : f32
    %26 = vector.broadcast %cst_14 : f32 to vector<1x32xf32>
    %27 = arith.mulf %25, %26 : vector<1x32xf32>
    %c2_15 = arith.constant 2 : index
    %c0_16 = arith.constant 0 : index
    %28 = vector.load %arg3[%c2_15, %c0_16] : memref<8x32xf32, #tpu.memory_space<vmem>>, vector<1x32xf32>
    %29 = arith.addf %27, %28 : vector<1x32xf32>
    %c0_17 = arith.constant 0 : index
    %c2_18 = arith.constant 2 : index
    %c0_19 = arith.constant 0 : index
    %30 = vector.load %arg4[%c0_17, %c2_18, %c0_19] : memref<1x8x32xf32, #tpu.memory_space<vmem>>, vector<1x1x32xf32>
    %31 = vector.shape_cast %30 : vector<1x1x32xf32> to vector<1x32xf32>
    %32 = vector.shape_cast %29 : vector<1x32xf32> to vector<1x1x32xf32>
    tpu.vector_store %arg4[%c0_17, %c2_18, %c0_19], %32 {strides = array<i32>} : memref<1x8x32xf32, #tpu.memory_space<vmem>>, vector<1x1x32xf32>,
    %33 = arith.index_cast %arg0 : i32 to index
    %c3 = arith.constant 3 : index
    %34 = memref.load %arg1[%33, %c3] : memref<2x8xi32, #tpu.memory_space<smem>>
    %35 = arith.index_cast %34 : i32 to index
    %c0_20 = arith.constant 0 : index
    %36 = vector.load %arg2[%35, %c0_20] : memref<100x32xf32, #tpu.memory_space<vmem>>, vector<1x32xf32>
    %cst_21 = arith.constant 5.65685415 : f32
    %37 = vector.broadcast %cst_21 : f32 to vector<1x32xf32>
    %38 = arith.mulf %36, %37 : vector<1x32xf32>
    %c3_22 = arith.constant 3 : index
    %c0_23 = arith.constant 0 : index
    %39 = vector.load %arg3[%c3_22, %c0_23] : memref<8x32xf32, #tpu.memory_space<vmem>>, vector<1x32xf32>
    %40 = arith.addf %38, %39 : vector<1x32xf32>
    %c0_24 = arith.constant 0 : index
    %c3_25 = arith.constant 3 : index
    %c0_26 = arith.constant 0 : index
    %41 = vector.load %arg4[%c0_24, %c3_25, %c0_26] : memref<1x8x32xf32, #tpu.memory_space<vmem>>, vector<1x1x32xf32>
    %42 = vector.shape_cast %41 : vector<1x1x32xf32> to vector<1x32xf32>
    %43 = vector.shape_cast %40 : vector<1x32xf32> to vector<1x1x32xf32>
    tpu.vector_store %arg4[%c0_24, %c3_25, %c0_26], %43 {strides = array<i32>} : memref<1x8x32xf32, #tpu.memory_space<vmem>>, vector<1x1x32xf32>,
    %44 = arith.index_cast %arg0 : i32 to index
    %c4 = arith.constant 4 : index
    %45 = memref.load %arg1[%44, %c4] : memref<2x8xi32, #tpu.memory_space<smem>>
    %46 = arith.index_cast %45 : i32 to index
    %c0_27 = arith.constant 0 : index
    %47 = vector.load %arg2[%46, %c0_27] : memref<100x32xf32, #tpu.memory_space<vmem>>, vector<1x32xf32>
    %cst_28 = arith.constant 5.65685415 : f32
    %48 = vector.broadcast %cst_28 : f32 to vector<1x32xf32>
    %49 = arith.mulf %47, %48 : vector<1x32xf32>
    %c4_29 = arith.constant 4 : index
    %c0_30 = arith.constant 0 : index
    %50 = vector.load %arg3[%c4_29, %c0_30] : memref<8x32xf32, #tpu.memory_space<vmem>>, vector<1x32xf32>
    %51 = arith.addf %49, %50 : vector<1x32xf32>
    %c0_31 = arith.constant 0 : index
    %c4_32 = arith.constant 4 : index
    %c0_33 = arith.constant 0 : index
    %52 = vector.load %arg4[%c0_31, %c4_32, %c0_33] : memref<1x8x32xf32, #tpu.memory_space<vmem>>, vector<1x1x32xf32>
    %53 = vector.shape_cast %52 : vector<1x1x32xf32> to vector<1x32xf32>
    %54 = vector.shape_cast %51 : vector<1x32xf32> to vector<1x1x32xf32>
    tpu.vector_store %arg4[%c0_31, %c4_32, %c0_33], %54 {strides = array<i32>} : memref<1x8x32xf32, #tpu.memory_space<vmem>>, vector<1x1x32xf32>,
    %55 = arith.index_cast %arg0 : i32 to index
    %c5 = arith.constant 5 : index
    %56 = memref.load %arg1[%55, %c5] : memref<2x8xi32, #tpu.memory_space<smem>>
    %57 = arith.index_cast %56 : i32 to index
    %c0_34 = arith.constant 0 : index
    %58 = vector.load %arg2[%57, %c0_34] : memref<100x32xf32, #tpu.memory_space<vmem>>, vector<1x32xf32>
    %cst_35 = arith.constant 5.65685415 : f32
    %59 = vector.broadcast %cst_35 : f32 to vector<1x32xf32>
    %60 = arith.mulf %58, %59 : vector<1x32xf32>
    %c5_36 = arith.constant 5 : index
    %c0_37 = arith.constant 0 : index
    %61 = vector.load %arg3[%c5_36, %c0_37] : memref<8x32xf32, #tpu.memory_space<vmem>>, vector<1x32xf32>
    %62 = arith.addf %60, %61 : vector<1x32xf32>
    %c0_38 = arith.constant 0 : index
    %c5_39 = arith.constant 5 : index
    %c0_40 = arith.constant 0 : index
    %63 = vector.load %arg4[%c0_38, %c5_39, %c0_40] : memref<1x8x32xf32, #tpu.memory_space<vmem>>, vector<1x1x32xf32>
    %64 = vector.shape_cast %63 : vector<1x1x32xf32> to vector<1x32xf32>
    %65 = vector.shape_cast %62 : vector<1x32xf32> to vector<1x1x32xf32>
    tpu.vector_store %arg4[%c0_38, %c5_39, %c0_40], %65 {strides = array<i32>} : memref<1x8x32xf32, #tpu.memory_space<vmem>>, vector<1x1x32xf32>,
    %66 = arith.index_cast %arg0 : i32 to index
    %c6 = arith.constant 6 : index
    %67 = memref.load %arg1[%66, %c6] : memref<2x8xi32, #tpu.memory_space<smem>>
    %68 = arith.index_cast %67 : i32 to index
    %c0_41 = arith.constant 0 : index
    %69 = vector.load %arg2[%68, %c0_41] : memref<100x32xf32, #tpu.memory_space<vmem>>, vector<1x32xf32>
    %cst_42 = arith.constant 5.65685415 : f32
    %70 = vector.broadcast %cst_42 : f32 to vector<1x32xf32>
    %71 = arith.mulf %69, %70 : vector<1x32xf32>
    %c6_43 = arith.constant 6 : index
    %c0_44 = arith.constant 0 : index
    %72 = vector.load %arg3[%c6_43, %c0_44] : memref<8x32xf32, #tpu.memory_space<vmem>>, vector<1x32xf32>
    %73 = arith.addf %71, %72 : vector<1x32xf32>
    %c0_45 = arith.constant 0 : index
    %c6_46 = arith.constant 6 : index
    %c0_47 = arith.constant 0 : index
    %74 = vector.load %arg4[%c0_45, %c6_46, %c0_47] : memref<1x8x32xf32, #tpu.memory_space<vmem>>, vector<1x1x32xf32>
    %75 = vector.shape_cast %74 : vector<1x1x32xf32> to vector<1x32xf32>
    %76 = vector.shape_cast %73 : vector<1x32xf32> to vector<1x1x32xf32>
    tpu.vector_store %arg4[%c0_45, %c6_46, %c0_47], %76 {strides = array<i32>} : memref<1x8x32xf32, #tpu.memory_space<vmem>>, vector<1x1x32xf32>,
    %77 = arith.index_cast %arg0 : i32 to index
    %c7 = arith.constant 7 : index
    %78 = memref.load %arg1[%77, %c7] : memref<2x8xi32, #tpu.memory_space<smem>>
    %79 = arith.index_cast %78 : i32 to index
    %c0_48 = arith.constant 0 : index
    %80 = vector.load %arg2[%79, %c0_48] : memref<100x32xf32, #tpu.memory_space<vmem>>, vector<1x32xf32>
    %cst_49 = arith.constant 5.65685415 : f32
    %81 = vector.broadcast %cst_49 : f32 to vector<1x32xf32>
    %82 = arith.mulf %80, %81 : vector<1x32xf32>
    %c7_50 = arith.constant 7 : index
    %c0_51 = arith.constant 0 : index
    %83 = vector.load %arg3[%c7_50, %c0_51] : memref<8x32xf32, #tpu.memory_space<vmem>>, vector<1x32xf32>
    %84 = arith.addf %82, %83 : vector<1x32xf32>
    %c0_52 = arith.constant 0 : index
    %c7_53 = arith.constant 7 : index
    %c0_54 = arith.constant 0 : index
    %85 = vector.load %arg4[%c0_52, %c7_53, %c0_54] : memref<1x8x32xf32, #tpu.memory_space<vmem>>, vector<1x1x32xf32>
    %86 = vector.shape_cast %85 : vector<1x1x32xf32> to vector<1x32xf32>
    %87 = vector.shape_cast %84 : vector<1x32xf32> to vector<1x1x32xf32>
    tpu.vector_store %arg4[%c0_52, %c7_53, %c0_54], %87 {strides = array<i32>} : memref<1x8x32xf32, #tpu.memory_space<vmem>>, vector<1x1x32xf32>,
    return
  }
  func.func @transform_0(%arg0: i32, %arg1: memref<2x8xi32, #tpu.memory_space<smem>>) -> (i32, i32) {
    %c0_i32 = arith.constant 0 : i32
    %c0_i32_0 = arith.constant 0 : i32
    %c0_i32_1 = arith.constant 0 : i32
    return %c0_i32, %c0_i32_0 : i32, i32
  }
  func.func @transform_1(%arg0: i32, %arg1: memref<2x8xi32, #tpu.memory_space<smem>>) -> (i32, i32) {
    %c0_i32 = arith.constant 0 : i32
    %c0_i32_0 = arith.constant 0 : i32
    %c0_i32_1 = arith.constant 0 : i32
    return %c0_i32, %c0_i32_0 : i32, i32
  }
  func.func @transform_2(%arg0: i32, %arg1: memref<2x8xi32, #tpu.memory_space<smem>>) -> (i32, i32, i32) {
    %c0_i32 = arith.constant 0 : i32
    %c0_i32_0 = arith.constant 0 : i32
    %c0_i32_1 = arith.constant 0 : i32
    return %arg0, %c0_i32, %c0_i32_0 : i32, i32, i32
  }
}

</mosaic_0001>

<llo_original>
// kernel: tpu_custom_call.1
$region0: #{tpu_custom_call.1}
  #allocation0 [shape = 'u32[]', space=smem, size = 0x4, offset = 0x4, fixed_abs, tag = 'smem constant byte address 0x4 - core index']
  #allocation1 [shape = 'u32[72,128]{1,0:T(1,128)}', space=vmem, size = 0x9000, scoped, tag = 'internal scratch']
  #allocation2 [shape = 's32[1]{0}', space=sflag, size = 0x4, scoped, tag = 'scoped memory for tpu_custom_call.1']
  #allocation3 [shape = 'u8[1024]{0}', space=smem, size = 0x400, scoped, tag = 'prefetched SMEM operand 0']
  %s0 = inlined_call_operand.vmem [shape: s32[2,8], index: 0, kind: input, shape index: {}]
  %s1 = inlined_call_operand.vmem [shape: f32[100,32], index: 1, kind: input, shape index: {}]
  %s2 = inlined_call_operand.vmem [shape: f32[8,32], index: 2, kind: input, shape index: {}]
  %s3 = inlined_call_operand.hbm [shape: f32[2,8,32], index: 3, kind: output, shape index: {}]
  %s4 = sld [smem:[#allocation0]]
  $region41: #{tpu_custom_call.1} parent=0
    _
  %s6 = ssub.s32 1, %s4
  %s7 = scalar_select 0, %s6, %s4
  %s9 = sshll.u32 %s0, 4
  %s10 = int_to_ptr.vmem [resolvable:$true] %s9
  %12 = dma.vmem_to_smem %s10, 32, [#allocation3], [#allocation2]
  %14 = dma.done [#allocation2], 32
  %15 = sfence
  $region1: #{tpu_custom_call.1} parent=0
    #allocation4 [shape = 'u8[8192]{0}', space=vmem, size = 0x2000, scoped, tag = 'output window, operand 0']
    #allocation5 [shape = 's32[2]{0}', space=sflag, size = 0x8, scoped, tag = 'scoped memory for tpu_custom_call.1']
    %16 = vsyncpa [#allocation5], 0
    %s17 = scalar_lea.sflag [#allocation5], 1
    %18 = vsyncpa %s17, 0
    loop: start=0, step=1, limit=4
    $region2: #{tpu_custom_call.1} parent=1 // loop_pre_header
      _
    $region3: #{tpu_custom_call.1} parent=1 // loop_header
      %s20 = sphi 0, %s24
      %p21 = scmp.ge.s32.totalorder %s20, 4
      %s28 = sphi 0, %s28
      %s30 = sphi 0, %s28
      %s31 = sphi 0, %s30
      %s45 = sphi 0, %s31
      %s49 = sphi 0, %s49
      %s51 = sphi 0, %s49
      %s52 = sphi 0, %s51
      %s66 = sphi 0, %s52
      %s72 = sphi 0, %s74
      %s75 = sphi 0, %s72
      %s76 = sphi 0, %s75
      %s92 = sphi 0, %s76
    $region4: #{tpu_custom_call.1} parent=1 // loop_header_branch
      %23 = sbr.rel (%p21) target = $region8
    $region5: #{tpu_custom_call.1} parent=1 // loop_body
      %s25 = ssub.s32 %s20, 1
      %s26 = ssub.s32 %s20, 2
      %s27 = sadd.s32 %s20, 1
      %s29 = sadd.s32 %s28, 1
      %p32 = scmp.eq.s32.totalorder %s20, 1
      %p33 = scmp.ne.s32.totalorder %s28, %s30
      %p34 = scmp.eq.s32.totalorder %s20, 0
      %p35 = por %p33, %p34
      %p36 = scmp.ne.s32.totalorder %s28, %s30
      %p37 = scmp.eq.s32.totalorder %s25, 1
      %p38 = por %p36, %p37
      %p39 = scmp.ne.s32.totalorder %s30, %s31
      %p40 = scmp.eq.s32.totalorder %s25, 0
      %p41 = por %p39, %p40
      %p42 = scmp.ne.s32.totalorder %s30, %s31
      %p43 = scmp.eq.s32.totalorder %s26, 1
      %p44 = por %p42, %p43
      %p46 = scmp.ne.s32.totalorder %s31, %s45
      %p47 = scmp.eq.s32.totalorder %s26, 0
      %p48 = por %p46, %p47
      %s50 = sadd.s32 %s49, 1
      %p53 = scmp.eq.s32.totalorder %s20, 1
      %p54 = scmp.ne.s32.totalorder %s49, %s51
      %p55 = scmp.eq.s32.totalorder %s20, 0
      %p56 = por %p54, %p55
      %p57 = scmp.ne.s32.totalorder %s49, %s51
      %p58 = scmp.eq.s32.totalorder %s25, 1
      %p59 = por %p57, %p58
      %p60 = scmp.ne.s32.totalorder %s51, %s52
      %p61 = scmp.eq.s32.totalorder %s25, 0
      %p62 = por %p60, %p61
      %p63 = scmp.ne.s32.totalorder %s51, %s52
      %p64 = scmp.eq.s32.totalorder %s26, 1
      %p65 = por %p63, %p64
      %p67 = scmp.ne.s32.totalorder %s52, %s66
      %p68 = scmp.eq.s32.totalorder %s26, 0
      %p69 = por %p67, %p68
      %s70 = ssub.s32 %s20, %s27
      %p71 = scmp.eq.s32.totalorder %s70, 0
      %s73 = sadd.s32 %s72, 1
      %s74 = scalar_select %p71, %s72, %s73
      %p77 = pneg %p71
      %p78 = scmp.eq.s32.totalorder %s20, 1
      %p79 = por %p77, %p78
      %p80 = scmp.ne.s32.totalorder %s72, %s75
      %p81 = scmp.eq.s32.totalorder %s20, 0
      %p82 = por %p80, %p81
      %p83 = scmp.ne.s32.totalorder %s72, %s75
      %p84 = scmp.eq.s32.totalorder %s25, 1
      %p85 = por %p83, %p84
      %p86 = scmp.ne.s32.totalorder %s75, %s76
      %p87 = scmp.eq.s32.totalorder %s25, 0
      %p88 = por %p86, %p87
      %p89 = scmp.ne.s32.totalorder %s75, %s76
      %p90 = scmp.eq.s32.totalorder %s26, 1
      %p91 = por %p89, %p90
      %p93 = scmp.ne.s32.totalorder %s76, %s92
      %p94 = scmp.eq.s32.totalorder %s26, 0
      %p95 = por %p93, %p94
      %p96 = scmp.le.s32.totalorder 1, %s20
      %p97 = scmp.lt.s32.totalorder %s20, 3
      %p98 = pnand %p96, %p97
      %p99 = pneg %p98
      // Predicated region
      $region9: #{tpu_custom_call.1} parent=5 // pred_check
        _
      $region10: #{tpu_custom_call.1} parent=5 // pred_check_branch
        %101 = sbr.rel (%p98) target = $region12
      $region11: #{tpu_custom_call.1} parent=5 // pred_region
        %s102 = ssub.s32 %s20, 1
        // Predicated region
        $region13: #{tpu_custom_call.1} parent=11 // pred_check
          %p103 = pneg %p41
        $region14: #{tpu_custom_call.1} parent=11 // pred_check_branch
          %105 = sbr.rel (%p103) target = $region16
        $region15: #{tpu_custom_call.1} parent=11 // pred_region
          _
        $region16: #{tpu_custom_call.1} parent=11 // pred_fallthru
          _
        // Predicated region
        $region17: #{tpu_custom_call.1} parent=11 // pred_check
          %p106 = pneg %p62
        $region18: #{tpu_custom_call.1} parent=11 // pred_check_branch
          %108 = sbr.rel (%p106) target = $region20
        $region19: #{tpu_custom_call.1} parent=11 // pred_region
          _
        $region20: #{tpu_custom_call.1} parent=11 // pred_fallthru
          _
      $region12: #{tpu_custom_call.1} parent=5 // pred_fallthru
        _
      %p109 = scmp.lt.s32.totalorder %s20, 2
      // Predicated region
      $region21: #{tpu_custom_call.1} parent=5 // pred_check
        %p110 = pneg %p109
      $region22: #{tpu_custom_call.1} parent=5 // pred_check_branch
        %112 = sbr.rel (%p110) target = $region24
      $region23: #{tpu_custom_call.1} parent=5 // pred_region
        _
      $region24: #{tpu_custom_call.1} parent=5 // pred_fallthru
        _
      %p113 = scmp.le.s32.totalorder 1, %s20
      %p114 = scmp.lt.s32.totalorder %s20, 3
      %p115 = pnand %p113, %p114
      %p116 = pneg %p115
      // Predicated region
      $region25: #{tpu_custom_call.1} parent=5 // pred_check
        _
      $region26: #{tpu_custom_call.1} parent=5 // pred_check_branch
        %118 = sbr.rel (%p115) target = $region28
      $region27: #{tpu_custom_call.1} parent=5 // pred_region
        %s119 = ssub.s32 %s20, 1
        %p120 = pneg %p41
        %p121 = pneg %p38
        %p122 = pneg %p62
        %p123 = pneg %p59
        %p124 = pneg %p88
        %p125 = pneg %p85
        %s126 = sand.u32 %s75, 1
        %s127 = scalar_lea.sflag [#allocation5], %s126
        %s128 = sand.u32 %s75, 1
        %s129 = smul.addr %s128, 8
        %s130 = scalar_lea.vmem [#allocation4], %s129
        %s131 = smul.u32 %s25, 128
        %s132 = sld [smem:[#allocation3 + %s131]]
        %s133 = scalar_lea.vmem %s1, %s132
        %v134 = vld [vmem:[%s133] sm:$0x1]
        %v135 = vmul.f32 %v134, 5.656854
        %v136 = vld [vmem:[%s2] sm:$0x1]
        %v137 = vadd.f32 %v135, %v136
        %vm138 = vcmask 253952
        %139 = vst.msk [vmem:[%s130] sm:$0x1] %vm138, %v137
        %s140 = sadd.s32 %s131, 1
        %s141 = sld [smem:[#allocation3 + %s140]]
        %s142 = scalar_lea.vmem %s1, %s141
        %v143 = vld [vmem:[%s142] sm:$0x1]
        %v144 = vmul.f32 %v143, 5.656854
        %v145 = vld [vmem:[%s2 + $0x1] sm:$0x1]
        %v146 = vadd.f32 %v144, %v145
        %147 = vst.msk [vmem:[%s130 + $0x1] sm:$0x1] %vm138, %v146
        %s148 = sadd.s32 %s131, 2
        %s149 = sld [smem:[#allocation3 + %s148]]
        %s150 = scalar_lea.vmem %s1, %s149
        %v151 = vld [vmem:[%s150] sm:$0x1]
        %v152 = vmul.f32 %v151, 5.656854
        %v153 = vld [vmem:[%s2 + $0x2] sm:$0x1]
        %v154 = vadd.f32 %v152, %v153
        %155 = vst.msk [vmem:[%s130 + $0x2] sm:$0x1] %vm138, %v154
        %s156 = sadd.s32 %s131, 3
        %s157 = sld [smem:[#allocation3 + %s156]]
        %s158 = scalar_lea.vmem %s1, %s157
        %v159 = vld [vmem:[%s158] sm:$0x1]
        %v160 = vmul.f32 %v159, 5.656854
        %v161 = vld [vmem:[%s2 + $0x3] sm:$0x1]
        %v162 = vadd.f32 %v160, %v161
        %163 = vst.msk [vmem:[%s130 + $0x3] sm:$0x1] %vm138, %v162
        %s164 = sadd.s32 %s131, 4
        %s165 = sld [smem:[#allocation3 + %s164]]
        %s166 = scalar_lea.vmem %s1, %s165
        %v167 = vld [vmem:[%s166] sm:$0x1]
        %v168 = vmul.f32 %v167, 5.656854
        %v169 = vld [vmem:[%s2 + $0x4] sm:$0x1]
        %v170 = vadd.f32 %v168, %v169
        %171 = vst.msk [vmem:[%s130 + $0x4] sm:$0x1] %vm138, %v170
        %s172 = sadd.s32 %s131, 5
        %s173 = sld [smem:[#allocation3 + %s172]]
        %s174 = scalar_lea.vmem %s1, %s173
        %v175 = vld [vmem:[%s174] sm:$0x1]
        %v176 = vmul.f32 %v175, 5.656854
        %v177 = vld [vmem:[%s2 + $0x5] sm:$0x1]
        %v178 = vadd.f32 %v176, %v177
        %179 = vst.msk [vmem:[%s130 + $0x5] sm:$0x1] %vm138, %v178
        %s180 = sadd.s32 %s131, 6
        %s181 = sld [smem:[#allocation3 + %s180]]
        %s182 = scalar_lea.vmem %s1, %s181
        %v183 = vld [vmem:[%s182] sm:$0x1]
        %v184 = vmul.f32 %v183, 5.656854
        %v185 = vld [vmem:[%s2 + $0x6] sm:$0x1]
        %v186 = vadd.f32 %v184, %v185
        %187 = vst.msk [vmem:[%s130 + $0x6] sm:$0x1] %vm138, %v186
        %s188 = sadd.s32 %s131, 7
        %s189 = sld [smem:[#allocation3 + %s188]]
        %s190 = scalar_lea.vmem %s1, %s189
        %v191 = vld [vmem:[%s190] sm:$0x1]
        %v192 = vmul.f32 %v191, 5.656854
        %v193 = vld [vmem:[%s2 + $0x7] sm:$0x1]
        %v194 = vadd.f32 %v192, %v193
        %195 = vst.msk [vmem:[%s130 + $0x7] sm:$0x1] %vm138, %v194
        %s196 = sand.u32 %s75, 1
        %s197 = scalar_lea.sflag [#allocation5], %s196
        %s198 = sand.u32 %s75, 1
        %s199 = smul.addr %s198, 8
        %s200 = scalar_lea.vmem [#allocation4], %s199
        // Predicated region
        $region29: #{tpu_custom_call.1} parent=27 // pred_check
          %p201 = pneg %p85
        $region30: #{tpu_custom_call.1} parent=27 // pred_check_branch
          %203 = sbr.rel (%p201) target = $region32
        $region31: #{tpu_custom_call.1} parent=27 // pred_region
          %205 = vsyncadd %s197, 0
          %s206 = smul.addr %s25, 8
          %s207 = scalar_lea.hbm %s3, %s206
          %s209 = sshll.u32 %s200, 4
          %s210 = int_to_ptr.vmem [resolvable:$true] %s209
          %s211 = sshll.u32 %s207, 4
          %s212 = int_to_ptr.hbm [resolvable:$true] %s211
          %214 = dma.vmem_to_hbm [thread:$0]  %s210, 128, %s212, %s197
        $region32: #{tpu_custom_call.1} parent=27 // pred_fallthru
          _
      $region28: #{tpu_custom_call.1} parent=5 // pred_fallthru
        _
      %p215 = scmp.le.s32.totalorder 2, %s20
      // Predicated region
      $region33: #{tpu_custom_call.1} parent=5 // pred_check
        %p216 = pneg %p215
      $region34: #{tpu_custom_call.1} parent=5 // pred_check_branch
        %218 = sbr.rel (%p216) target = $region36
      $region35: #{tpu_custom_call.1} parent=5 // pred_region
        %s219 = ssub.s32 %s20, 2
        // Predicated region
        $region37: #{tpu_custom_call.1} parent=35 // pred_check
          %p220 = pneg %p91
        $region38: #{tpu_custom_call.1} parent=35 // pred_check_branch
          %222 = sbr.rel (%p220) target = $region40
        $region39: #{tpu_custom_call.1} parent=35 // pred_region
          %s223 = sand.u32 %s76, 1
          %s224 = scalar_lea.sflag [#allocation5], %s223
          %s225 = sand.u32 %s76, 1
          %s226 = smul.addr %s225, 8
          %s227 = scalar_lea.vmem [#allocation4], %s226
          %229 = dma.done %s224, 128
        $region40: #{tpu_custom_call.1} parent=35 // pred_fallthru
          _
      $region36: #{tpu_custom_call.1} parent=5 // pred_fallthru
        _
    $region6: #{tpu_custom_call.1} parent=1 // loop_footer
      %s24 = sadd.s32 1, %s20
    $region7: #{tpu_custom_call.1} parent=1 // loop_footer_branch
      %19 = sbr.rel target = $region3
    $region8: #{tpu_custom_call.1} parent=1 // loop_exit
      _
    %230 = vsyncpa [#allocation5], 1
    %s231 = scalar_lea.sflag [#allocation5], 1
    %232 = vsyncpa %s231, 1

</llo_original>
